<compile_context>
chip_gen: v6e
topology: v6e:2x2x1
jax: 0.10.0
libtpu: 0.0.40
codegen_flags: <defaults>
</compile_context>

<pallas_src>
import jax
import jax.numpy as jnp
from jax.experimental import pallas as pl
from jax.experimental.pallas import tpu as pltpu


def _round_up(n, m):
    return ((n + m - 1) // m) * m


def highway_kernel(x_ref, w_ref, b_ref, o_ref):
    # Fused matmul: (TM, E) @ (E, 2E) -> (TM, 2E), f32 accumulation on the MXU.
    pg = jnp.dot(x_ref[...], w_ref[...], preferred_element_type=jnp.float32)
    pg = pg + b_ref[...]                       # broadcast (1, 2E)

    E = o_ref.shape[-1]
    proj = jnp.maximum(pg[:, :E], 0.0)         # relu branch
    gate = jax.nn.sigmoid(pg[:, E:])           # gate branch (EUP exp)

    # Keep post-matmul elementwise in f32 (v5e VPU has no bf16).
    x = x_ref[...].astype(jnp.float32)
    # proj*gate + (1-gate)*x  ==  x + gate*(proj - x)
    o_ref[...] = (x + gate * (proj - x)).astype(o_ref.dtype)


def highway_pallas(x, w_proj, b_proj, w_gate, b_gate, *, tile_m=512,
                   use_bf16=False):
    """x: (..., E). Weights follow PyTorch nn.Linear convention:
    w_*: (E, E), b_*: (E,). Returns array with the same shape/dtype as x."""
    orig_shape = x.shape
    E = orig_shape[-1]
    x2 = x.reshape(-1, E)
    N = x2.shape[0]

    # --- Fuse the two linears into one (E, 2E) weight + (1, 2E) bias (glue). ---
    w_fused = jnp.concatenate([w_proj.T, w_gate.T], axis=1)        # (E, 2E)
    b_fused = jnp.concatenate([b_proj, b_gate]).reshape(1, 2 * E)  # f32 bias

    x_in = x2
    if use_bf16:
        x_in = x2.astype(jnp.bfloat16)
        w_fused = w_fused.astype(jnp.bfloat16)

    # --- Tile sizing: big tiles, multiple of 8 sublanes, ragged tail padded. ---
    tile_m = max(8, min(_round_up(tile_m, 8), _round_up(N, 8)))
    if N >= 16:
        # Keep >= 2 grid steps so v7x's two TensorCores both get work.
        tile_m = min(tile_m, _round_up(pl.cdiv(N, 2), 8))
    n_pad = _round_up(N, tile_m)
    if n_pad != N:
        x_in = jnp.pad(x_in, ((0, n_pad - N), (0, 0)))

    grid = (n_pad // tile_m,)

    # --- VMEM budget (only raise the scoped limit if the defaults are tight). ---
    xbytes = jnp.dtype(x_in.dtype).itemsize
    wbytes = jnp.dtype(w_fused.dtype).itemsize
    vmem_est = (2 * E * 2 * E * wbytes          # fused weight (resident)
                + 2 * tile_m * E * xbytes       # x tile, double-buffered
                + 2 * tile_m * E * 4            # out tile, double-buffered
                + 2 * 2 * E * 4                 # bias
                + 2 * tile_m * 2 * E * 4)       # (TM, 2E) f32 intermediates
    compiler_kwargs = dict(dimension_semantics=("parallel",))
    if vmem_est > 32 * 1024 * 1024:
        # TODO(synk): for very large E on v7x (64 MiB VMEM/TC) add K-dim tiling
        # with a f32 accumulator instead of holding full (E, 2E) weights.
        compiler_kwargs["vmem_limit_bytes"] = min(int(vmem_est * 1.25),
                                                  64 * 1024 * 1024)

    out = pl.pallas_call(
        highway_kernel,
        out_shape=jax.ShapeDtypeStruct((n_pad, E), x.dtype),
        grid_spec=pltpu.PrefetchScalarGridSpec(
            num_scalar_prefetch=0,
            grid=grid,
            in_specs=[
                pl.BlockSpec((tile_m, E), lambda i: (i, 0)),     # x tile
                pl.BlockSpec((E, 2 * E), lambda i: (0, 0)),      # fused W (resident)
                pl.BlockSpec((1, 2 * E), lambda i: (0, 0)),      # fused bias
            ],
            out_specs=pl.BlockSpec((tile_m, E), lambda i: (i, 0)),
        ),
        compiler_params=pltpu.CompilerParams(**compiler_kwargs),
    )(x_in, w_fused, b_fused)

    if n_pad != N:
        out = out[:N]
    return out.reshape(orig_shape)


def highway_ref(x, w_proj, b_proj, w_gate, b_gate):
    """Pure-JAX reference matching the PyTorch module semantics."""
    proj = jax.nn.relu(x @ w_proj.T + b_proj)
    gate = jax.nn.sigmoid(x @ w_gate.T + b_gate)
    return proj * gate + (1.0 - gate) * x


if __name__ == "__main__":
    key = jax.random.PRNGKey(0)
    embedding_size = 128
    batch, seq = 2, 10            # N = 20 rows -> exercises padding + 2 grid steps

    k_x, k_wp, k_bp, k_wg, k_bg = jax.random.split(key, 5)

    x = jax.random.normal(k_x, (batch, seq, embedding_size), dtype=jnp.float32)
    bound = 1.0 / (embedding_size ** 0.5)
    w_proj = jax.random.uniform(k_wp, (embedding_size, embedding_size),
                                minval=-bound, maxval=bound, dtype=jnp.float32)
    b_proj = jax.random.uniform(k_bp, (embedding_size,),
                                minval=-bound, maxval=bound, dtype=jnp.float32)
    w_gate = jax.random.uniform(k_wg, (embedding_size, embedding_size),
                                minval=-bound, maxval=bound, dtype=jnp.float32)
    b_gate = jax.random.uniform(k_bg, (embedding_size,),
                                minval=-bound, maxval=bound, dtype=jnp.float32)

    ref = highway_ref(x, w_proj, b_proj, w_gate, b_gate)

    # f32 path: exact (within f32 tolerance) match against the reference.
    out = highway_pallas(x, w_proj, b_proj, w_gate, b_gate)
    out = jax.block_until_ready(out)
    assert out.shape == x.shape
    assert jnp.allclose(out, ref, atol=1e-5, rtol=1e-5)

    # bf16-storage path (f32 accumulation/elementwise): loose tolerance.
    out_bf16 = highway_pallas(x, w_proj, b_proj, w_gate, b_gate, use_bf16=True)
    out_bf16 = jax.block_until_ready(out_bf16)
    assert jnp.allclose(out_bf16, ref, atol=5e-2, rtol=5e-2)

    print("KERNEL_OK")
</pallas_src>

<mosaic_0001>
module attributes {stable_mosaic.version = 11 : i64} {
  func.func @highway_kernel(%arg0: i32, %arg1: memref<16x128xf32, #tpu.memory_space<vmem>>, %arg2: memref<128x256xf32, #tpu.memory_space<vmem>>, %arg3: memref<1x256xf32, #tpu.memory_space<vmem>>, %arg4: memref<16x128xf32, #tpu.memory_space<vmem>>) attributes {dimension_semantics = [#tpu.dimension_semantics<parallel>], iteration_bounds = array<i64: 2>, scalar_prefetch = 0 : i64, scratch_operands = 0 : i64, tpu.core_type = #tpu.core_type<tc>, window_params = [{transform_indices = @transform_0, window_bounds = array<i64: 16, 128>}, {pipeline_mode = #tpu.pipeline_mode<synchronous>, transform_indices = @transform_1, window_bounds = array<i64: 128, 256>}, {pipeline_mode = #tpu.pipeline_mode<synchronous>, transform_indices = @transform_2, window_bounds = array<i64: 1, 256>}, {transform_indices = @transform_3, window_bounds = array<i64: 16, 128>}]} {
    %c0 = arith.constant 0 : index
    %c0_0 = arith.constant 0 : index
    %0 = vector.load %arg1[%c0, %c0_0] : memref<16x128xf32, #tpu.memory_space<vmem>>, vector<16x128xf32>
    %c0_1 = arith.constant 0 : index
    %c0_2 = arith.constant 0 : index
    %1 = vector.load %arg2[%c0_1, %c0_2] : memref<128x256xf32, #tpu.memory_space<vmem>>, vector<128x256xf32>
    %cst = arith.constant dense<0.000000e+00> : vector<16x256xf32>
    %2 = tpu.matmul %0, %1, %cst {dimension_numbers = #tpu.dot_dimension_numbers<[1], [0], [0], [1], [0, 0, 1, 1], [], []>} : vector<16x128xf32>, vector<128x256xf32>, vector<16x256xf32> -> vector<16x256xf32>
    %c0_3 = arith.constant 0 : index
    %c0_4 = arith.constant 0 : index
    %3 = vector.load %arg3[%c0_3, %c0_4] : memref<1x256xf32, #tpu.memory_space<vmem>>, vector<1x256xf32>
    %4 = vector.broadcast %3 : vector<1x256xf32> to vector<16x256xf32>
    %5 = arith.addf %2, %4 : vector<16x256xf32>
    %6 = vector.extract_strided_slice %5 {offsets = [0, 0], sizes = [16, 128], strides = [1, 1]} : vector<16x256xf32> to vector<16x128xf32>
    %cst_5 = arith.constant 0.000000e+00 : f32
    %7 = vector.broadcast %cst_5 : f32 to vector<16x128xf32>
    %8 = arith.maximumf %6, %7 : vector<16x128xf32>
    %9 = vector.extract_strided_slice %5 {offsets = [0, 128], sizes = [16, 128], strides = [1, 1]} : vector<16x256xf32> to vector<16x128xf32>
    %10 = arith.negf %9 : vector<16x128xf32>
    %11 = math.exp %10 : vector<16x128xf32>
    %cst_6 = arith.constant 1.000000e+00 : f32
    %12 = vector.broadcast %cst_6 : f32 to vector<16x128xf32>
    %13 = arith.addf %12, %11 : vector<16x128xf32>
    %14 = arith.divf %12, %13 : vector<16x128xf32>
    %c0_7 = arith.constant 0 : index
    %c0_8 = arith.constant 0 : index
    %15 = vector.load %arg1[%c0_7, %c0_8] : memref<16x128xf32, #tpu.memory_space<vmem>>, vector<16x128xf32>
    %16 = arith.subf %8, %15 : vector<16x128xf32>
    %17 = arith.mulf %14, %16 : vector<16x128xf32>
    %18 = arith.addf %15, %17 : vector<16x128xf32>
    %c0_9 = arith.constant 0 : index
    %c0_10 = arith.constant 0 : index
    %19 = vector.load %arg4[%c0_9, %c0_10] : memref<16x128xf32, #tpu.memory_space<vmem>>, vector<16x128xf32>
    tpu.vector_store %arg4[%c0_9, %c0_10], %18 {strides = array<i32>} : memref<16x128xf32, #tpu.memory_space<vmem>>, vector<16x128xf32>,
    return
  }
  func.func @transform_0(%arg0: i32) -> (i32, i32) {
    %c0_i32 = arith.constant 0 : i32
    %c0_i32_0 = arith.constant 0 : i32
    return %arg0, %c0_i32 : i32, i32
  }
  func.func @transform_1(%arg0: i32) -> (i32, i32) {
    %c0_i32 = arith.constant 0 : i32
    %c0_i32_0 = arith.constant 0 : i32
    %c0_i32_1 = arith.constant 0 : i32
    return %c0_i32, %c0_i32_0 : i32, i32
  }
  func.func @transform_2(%arg0: i32) -> (i32, i32) {
    %c0_i32 = arith.constant 0 : i32
    %c0_i32_0 = arith.constant 0 : i32
    %c0_i32_1 = arith.constant 0 : i32
    return %c0_i32, %c0_i32_0 : i32, i32
  }
  func.func @transform_3(%arg0: i32) -> (i32, i32) {
    %c0_i32 = arith.constant 0 : i32
    %c0_i32_0 = arith.constant 0 : i32
    return %arg0, %c0_i32 : i32, i32
  }
}

</mosaic_0001>

<llo_original>
// kernel: tpu_custom_call.1
$region0: #{tpu_custom_call.1}
  #allocation0 [shape = 'u32[]', space=smem, size = 0x4, offset = 0x4, fixed_abs, tag = 'smem constant byte address 0x4 - core index']
  #allocation1 [shape = 'u32[144,128]{1,0:T(1,128)}', space=vmem, size = 0x12000, scoped, tag = 'internal scratch']
  %s0 = inlined_call_operand.hbm [shape: f32[32,128], index: 0, kind: input, shape index: {}]
  %s1 = inlined_call_operand.hbm [shape: f32[128,256], index: 1, kind: input, shape index: {}]
  %s2 = inlined_call_operand.vmem [shape: f32[1,256], index: 2, kind: input, shape index: {}]
  %s3 = inlined_call_operand.hbm [shape: f32[32,128], index: 3, kind: output, shape index: {}]
  %s4 = sld [smem:[#allocation0]]
  $region53: #{tpu_custom_call.1} parent=0
    _
  %s6 = ssub.s32 1, %s4
  %s7 = scalar_select 0, %s6, %s4
  $region1: #{tpu_custom_call.1} parent=0
    #allocation2 [shape = 'u8[16384]{0}', space=vmem, size = 0x4000, scoped, tag = 'input window, operand 0']
    #allocation3 [shape = 's32[2]{0}', space=sflag, size = 0x8, scoped, tag = 'scoped memory for tpu_custom_call.1']
    #allocation4 [shape = 's32[2]{0}', space=sflag, size = 0x8, scoped, tag = 'scoped memory for tpu_custom_call.1']
    #allocation5 [shape = 'u8[131072]{0}', space=vmem, size = 0x20000, scoped, tag = 'input window, operand 1, single buffered']
    #allocation6 [shape = 's32[1]{0}', space=sflag, size = 0x4, scoped, tag = 'scoped memory for tpu_custom_call.1']
    #allocation7 [shape = 'u8[16384]{0}', space=vmem, size = 0x4000, scoped, tag = 'output window, operand 0']
    %8 = vsyncpa [#allocation3], 0
    %s9 = scalar_lea.sflag [#allocation3], 1
    %10 = vsyncpa %s9, 0
    %11 = vsyncpa [#allocation6], 0
    %12 = vsyncpa [#allocation4], 0
    %s13 = scalar_lea.sflag [#allocation4], 1
    %14 = vsyncpa %s13, 0
    loop: start=0, step=1, limit=4
    $region2: #{tpu_custom_call.1} parent=1 // loop_pre_header
      _
    $region3: #{tpu_custom_call.1} parent=1 // loop_header
      %s16 = sphi 0, %s20
      %p17 = scmp.ge.s32.totalorder %s16, 4
      %s26 = sphi 0, %s28
      %s29 = sphi 0, %s26
      %s30 = sphi 0, %s29
      %s46 = sphi 0, %s30
      %s50 = sphi 0, %s50
      %s52 = sphi 0, %s50
      %s53 = sphi 0, %s52
      %s67 = sphi 0, %s53
      %s71 = sphi 0, %s71
      %s73 = sphi 0, %s71
      %s74 = sphi 0, %s73
      %s88 = sphi 0, %s74
      %s94 = sphi 0, %s96
      %s97 = sphi 0, %s94
      %s98 = sphi 0, %s97
      %s114 = sphi 0, %s98
    $region4: #{tpu_custom_call.1} parent=1 // loop_header_branch
      %19 = sbr.rel (%p17) target = $region8
    $region5: #{tpu_custom_call.1} parent=1 // loop_body
      %s21 = ssub.s32 %s16, 1
      %s22 = ssub.s32 %s16, 2
      %s23 = sadd.s32 %s16, 1
      %s24 = ssub.s32 %s16, %s23
      %p25 = scmp.eq.s32.totalorder %s24, 0
      %s27 = sadd.s32 %s26, 1
      %s28 = scalar_select %p25, %s26, %s27
      %p31 = pneg %p25
      %p32 = scmp.eq.s32.totalorder %s16, 1
      %p33 = por %p31, %p32
      %p34 = scmp.ne.s32.totalorder %s26, %s29
      %p35 = scmp.eq.s32.totalorder %s16, 0
      %p36 = por %p34, %p35
      %p37 = scmp.ne.s32.totalorder %s26, %s29
      %p38 = scmp.eq.s32.totalorder %s21, 1
      %p39 = por %p37, %p38
      %p40 = scmp.ne.s32.totalorder %s29, %s30
      %p41 = scmp.eq.s32.totalorder %s21, 0
      %p42 = por %p40, %p41
      %p43 = scmp.ne.s32.totalorder %s29, %s30
      %p44 = scmp.eq.s32.totalorder %s22, 1
      %p45 = por %p43, %p44
      %p47 = scmp.ne.s32.totalorder %s30, %s46
      %p48 = scmp.eq.s32.totalorder %s22, 0
      %p49 = por %p47, %p48
      %s51 = sadd.s32 %s50, 1
      %p54 = scmp.eq.s32.totalorder %s16, 1
      %p55 = scmp.ne.s32.totalorder %s50, %s52
      %p56 = scmp.eq.s32.totalorder %s16, 0
      %p57 = por %p55, %p56
      %p58 = scmp.ne.s32.totalorder %s50, %s52
      %p59 = scmp.eq.s32.totalorder %s21, 1
      %p60 = por %p58, %p59
      %p61 = scmp.ne.s32.totalorder %s52, %s53
      %p62 = scmp.eq.s32.totalorder %s21, 0
      %p63 = por %p61, %p62
      %p64 = scmp.ne.s32.totalorder %s52, %s53
      %p65 = scmp.eq.s32.totalorder %s22, 1
      %p66 = por %p64, %p65
      %p68 = scmp.ne.s32.totalorder %s53, %s67
      %p69 = scmp.eq.s32.totalorder %s22, 0
      %p70 = por %p68, %p69
      %s72 = sadd.s32 %s71, 1
      %p75 = scmp.eq.s32.totalorder %s16, 1
      %p76 = scmp.ne.s32.totalorder %s71, %s73
      %p77 = scmp.eq.s32.totalorder %s16, 0
      %p78 = por %p76, %p77
      %p79 = scmp.ne.s32.totalorder %s71, %s73
      %p80 = scmp.eq.s32.totalorder %s21, 1
      %p81 = por %p79, %p80
      %p82 = scmp.ne.s32.totalorder %s73, %s74
      %p83 = scmp.eq.s32.totalorder %s21, 0
      %p84 = por %p82, %p83
      %p85 = scmp.ne.s32.totalorder %s73, %s74
      %p86 = scmp.eq.s32.totalorder %s22, 1
      %p87 = por %p85, %p86
      %p89 = scmp.ne.s32.totalorder %s74, %s88
      %p90 = scmp.eq.s32.totalorder %s22, 0
      %p91 = por %p89, %p90
      %s92 = ssub.s32 %s16, %s23
      %p93 = scmp.eq.s32.totalorder %s92, 0
      %s95 = sadd.s32 %s94, 1
      %s96 = scalar_select %p93, %s94, %s95
      %p99 = pneg %p93
      %p100 = scmp.eq.s32.totalorder %s16, 1
      %p101 = por %p99, %p100
      %p102 = scmp.ne.s32.totalorder %s94, %s97
      %p103 = scmp.eq.s32.totalorder %s16, 0
      %p104 = por %p102, %p103
      %p105 = scmp.ne.s32.totalorder %s94, %s97
      %p106 = scmp.eq.s32.totalorder %s21, 1
      %p107 = por %p105, %p106
      %p108 = scmp.ne.s32.totalorder %s97, %s98
      %p109 = scmp.eq.s32.totalorder %s21, 0
      %p110 = por %p108, %p109
      %p111 = scmp.ne.s32.totalorder %s97, %s98
      %p112 = scmp.eq.s32.totalorder %s22, 1
      %p113 = por %p111, %p112
      %p115 = scmp.ne.s32.totalorder %s98, %s114
      %p116 = scmp.eq.s32.totalorder %s22, 0
      %p117 = por %p115, %p116
      %p118 = scmp.le.s32.totalorder 1, %s16
      %p119 = scmp.lt.s32.totalorder %s16, 3
      %p120 = pnand %p118, %p119
      %p121 = pneg %p120
      // Predicated region
      $region9: #{tpu_custom_call.1} parent=5 // pred_check
        _
      $region10: #{tpu_custom_call.1} parent=5 // pred_check_branch
        %123 = sbr.rel (%p120) target = $region12
      $region11: #{tpu_custom_call.1} parent=5 // pred_region
        %s124 = ssub.s32 %s16, 1
        // Predicated region
        $region13: #{tpu_custom_call.1} parent=11 // pred_check
          %p125 = pneg %p63
        $region14: #{tpu_custom_call.1} parent=11 // pred_check_branch
          %127 = sbr.rel (%p125) target = $region16
        $region15: #{tpu_custom_call.1} parent=11 // pred_region
          %s129 = ssub.s32 4096, 4096
          %130 = vsyncadd [#allocation6], %s129
          %s131 = sshll.u32 [#allocation5], 4
          %s132 = int_to_ptr.vmem [resolvable:$true] %s131
          %137 = dma.hbm_to_vmem [thread:$0]  %s1, 4096, %s132, [#allocation6], 256, 256, 16
        $region16: #{tpu_custom_call.1} parent=11 // pred_fallthru
          _
        // Predicated region
        $region17: #{tpu_custom_call.1} parent=11 // pred_check
          %p138 = pneg %p84
        $region18: #{tpu_custom_call.1} parent=11 // pred_check_branch
          %140 = sbr.rel (%p138) target = $region20
        $region19: #{tpu_custom_call.1} parent=11 // pred_region
          _
        $region20: #{tpu_custom_call.1} parent=11 // pred_fallthru
          _
      $region12: #{tpu_custom_call.1} parent=5 // pred_fallthru
        _
      %p141 = scmp.lt.s32.totalorder %s16, 2
      // Predicated region
      $region21: #{tpu_custom_call.1} parent=5 // pred_check
        %p142 = pneg %p141
      $region22: #{tpu_custom_call.1} parent=5 // pred_check_branch
        %144 = sbr.rel (%p142) target = $region24
      $region23: #{tpu_custom_call.1} parent=5 // pred_region
        // Predicated region
        $region25: #{tpu_custom_call.1} parent=23 // pred_check
          %p145 = pneg %p36
        $region26: #{tpu_custom_call.1} parent=23 // pred_check_branch
          %147 = sbr.rel (%p145) target = $region28
        $region27: #{tpu_custom_call.1} parent=23 // pred_region
          %s148 = sand.u32 %s26, 1
          %s149 = scalar_lea.sflag [#allocation3], %s148
          %s150 = sand.u32 %s26, 1
          %s151 = smul.addr %s150, 16
          %s152 = scalar_lea.vmem [#allocation2], %s151
          %s153 = smul.u32 2, %s16
          %s155 = ssub.s32 256, 256
          %156 = vsyncadd %s149, %s155
          %s157 = smul.addr %s153, 128
          %s158 = scalar_lea.hbm %s0, %s157
          %s159 = sshll.u32 %s152, 4
          %s160 = int_to_ptr.vmem [resolvable:$true] %s159
          %165 = dma.hbm_to_vmem [thread:$0]  %s158, 256, %s160, %s149, 128, 128, 8
        $region28: #{tpu_custom_call.1} parent=23 // pred_fallthru
          _
      $region24: #{tpu_custom_call.1} parent=5 // pred_fallthru
        _
      %p166 = scmp.le.s32.totalorder 1, %s16
      %p167 = scmp.lt.s32.totalorder %s16, 3
      %p168 = pnand %p166, %p167
      %p169 = pneg %p168
      // Predicated region
      $region29: #{tpu_custom_call.1} parent=5 // pred_check
        _
      $region30: #{tpu_custom_call.1} parent=5 // pred_check_branch
        %171 = sbr.rel (%p168) target = $region32
      $region31: #{tpu_custom_call.1} parent=5 // pred_region
        %s172 = ssub.s32 %s16, 1
        %s173 = sand.u32 %s29, 1
        %s174 = scalar_lea.sflag [#allocation3], %s173
        %s175 = sand.u32 %s29, 1
        %s176 = smul.addr %s175, 16
        %s177 = scalar_lea.vmem [#allocation2], %s176
        // Predicated region
        $region33: #{tpu_custom_call.1} parent=31 // pred_check
          %p178 = pneg %p42
        $region34: #{tpu_custom_call.1} parent=31 // pred_check_branch
          %180 = sbr.rel (%p178) target = $region36
        $region35: #{tpu_custom_call.1} parent=31 // pred_region
          %181 = dma.done %s174, 256
        $region36: #{tpu_custom_call.1} parent=31 // pred_fallthru
          _
        // Predicated region
        $region37: #{tpu_custom_call.1} parent=31 // pred_check
          %p182 = pneg %p63
        $region38: #{tpu_custom_call.1} parent=31 // pred_check_branch
          %184 = sbr.rel (%p182) target = $region40
        $region39: #{tpu_custom_call.1} parent=31 // pred_region
          %185 = dma.done [#allocation6], 4096
        $region40: #{tpu_custom_call.1} parent=31 // pred_fallthru
          _
        %s186 = sand.u32 %s29, 1
        %s187 = scalar_lea.sflag [#allocation3], %s186
        %s188 = sand.u32 %s29, 1
        %s189 = smul.addr %s188, 16
        %s190 = scalar_lea.vmem [#allocation2], %s189
        %p191 = pneg %p42
        %p192 = pneg %p39
        %p193 = pneg %p63
        %p194 = pneg %p60
        %p195 = pneg %p84
        %p196 = pneg %p81
        %p197 = pneg %p110
        %p198 = pneg %p107
        %s199 = sand.u32 %s97, 1
        %s200 = scalar_lea.sflag [#allocation4], %s199
        %s201 = sand.u32 %s97, 1
        %s202 = smul.addr %s201, 16
        %s203 = scalar_lea.vmem [#allocation7], %s202
        %s204 = smul.u32 2, %s21
        %s205 = smul.u32 2, %s21
        %v206 = vld [vmem:[%s177] sm:$0xff]
        %v207 = vld [vmem:[%s177 + $0x8] sm:$0xff]
        %v208 = vld [vmem:[#allocation5] sm:$0xff]
        %v209 = vld [vmem:[#allocation5 + $0x8] sm:$0xff]
        %v210 = vld [vmem:[#allocation5 + $0x10] sm:$0xff]
        %v211 = vld [vmem:[#allocation5 + $0x18] sm:$0xff]
        %v212 = vld [vmem:[#allocation5 + $0x20] sm:$0xff]
        %v213 = vld [vmem:[#allocation5 + $0x28] sm:$0xff]
        %v214 = vld [vmem:[#allocation5 + $0x30] sm:$0xff]
        %v215 = vld [vmem:[#allocation5 + $0x38] sm:$0xff]
        %v216 = vld [vmem:[#allocation5 + $0x40] sm:$0xff]
        %v217 = vld [vmem:[#allocation5 + $0x48] sm:$0xff]
        %v218 = vld [vmem:[#allocation5 + $0x50] sm:$0xff]
        %v219 = vld [vmem:[#allocation5 + $0x58] sm:$0xff]
        %v220 = vld [vmem:[#allocation5 + $0x60] sm:$0xff]
        %v221 = vld [vmem:[#allocation5 + $0x68] sm:$0xff]
        %v222 = vld [vmem:[#allocation5 + $0x70] sm:$0xff]
        %v223 = vld [vmem:[#allocation5 + $0x78] sm:$0xff]
        %v224 = vld [vmem:[#allocation5 + $0x80] sm:$0xff]
        %v225 = vld [vmem:[#allocation5 + $0x88] sm:$0xff]
        %v226 = vld [vmem:[#allocation5 + $0x90] sm:$0xff]
        %v227 = vld [vmem:[#allocation5 + $0x98] sm:$0xff]
        %v228 = vld [vmem:[#allocation5 + $0xa0] sm:$0xff]
        %v229 = vld [vmem:[#allocation5 + $0xa8] sm:$0xff]
        %v230 = vld [vmem:[#allocation5 + $0xb0] sm:$0xff]
        %v231 = vld [vmem:[#allocation5 + $0xb8] sm:$0xff]
        %v232 = vld [vmem:[#allocation5 + $0xc0] sm:$0xff]
        %v233 = vld [vmem:[#allocation5 + $0xc8] sm:$0xff]
        %v234 = vld [vmem:[#allocation5 + $0xd0] sm:$0xff]
        %v235 = vld [vmem:[#allocation5 + $0xd8] sm:$0xff]
        %v236 = vld [vmem:[#allocation5 + $0xe0] sm:$0xff]
        %v237 = vld [vmem:[#allocation5 + $0xe8] sm:$0xff]
        %v238 = vld [vmem:[#allocation5 + $0xf0] sm:$0xff]
        %v239 = vld [vmem:[#allocation5 + $0xf8] sm:$0xff]
        %v240 = vld [vmem:[%s2] sm:$0x3]
        %v242 = vlaneseq
        %v243 = vshrl.u32 %v242, 7
        %v244 = vsub.s32 0, %v243
        %v245 = vrot.slane %v240, %v244
        %v246 = vlaneseq
        %v247 = vshrl.u32 %v246, 7
        %v248 = vsub.s32 1, %v247
        %v249 = vrot.slane %v240, %v248
        %252 = vmatprep.subr.mxu0 %v239
        %253 = vmatpush1.msra.mxu0 %v238
        %254 = vmatprep.subr.mxu0 %v237
        %255 = vmatpush1.msra.mxu0 %v236
        %256 = vmatprep.subr.mxu0 %v235
        %257 = vmatpush1.msra.mxu0 %v234
        %258 = vmatprep.subr.mxu0 %v233
        %259 = vmatpush1.msra.mxu0 %v232
        %260 = vmatprep.subr.mxu0 %v231
        %261 = vmatpush1.msra.mxu0 %v230
        %262 = vmatprep.subr.mxu0 %v229
        %263 = vmatpush1.msra.mxu0 %v228
        %264 = vmatprep.subr.mxu0 %v227
        %265 = vmatpush1.msra.mxu0 %v226
        %266 = vmatprep.subr.mxu0 %v225
        %267 = vmatpush1.msra.mxu0 %v224
        %268 = vmatprep.subr.mxu0 %v223
        %269 = vmatpush1.msra.mxu0 %v222
        %270 = vmatprep.subr.mxu0 %v221
        %271 = vmatpush1.msra.mxu0 %v220
        %272 = vmatprep.subr.mxu0 %v219
        %273 = vmatpush1.msra.mxu0 %v218
        %274 = vmatprep.subr.mxu0 %v217
        %275 = vmatpush1.msra.mxu0 %v216
        %276 = vmatprep.subr.mxu0 %v215
        %277 = vmatpush1.msra.mxu0 %v214
        %278 = vmatprep.subr.mxu0 %v213
        %279 = vmatpush1.msra.mxu0 %v212
        %280 = vmatprep.subr.mxu0 %v211
        %281 = vmatpush1.msra.mxu0 %v210
        %282 = vmatprep.subr.mxu0 %v209
        %283 = vmatpush1.msra.mxu0 %v208
        %284 = vmatprep.subr.mxu0 0.0
        %285 = vmatpush2.msra.mxu0 0.0
        %286 = vmatprep.subr.mxu0 0.0
        %287 = vmatpush2.msra.mxu0 0.0
        %288 = vmatprep.subr.mxu0 0.0
        %289 = vmatpush2.msra.mxu0 0.0
        %290 = vmatprep.subr.mxu0 0.0
        %291 = vmatpush2.msra.mxu0 0.0
        %292 = vmatprep.subr.mxu0 0.0
        %293 = vmatpush2.msra.mxu0 0.0
        %294 = vmatprep.subr.mxu0 0.0
        %295 = vmatpush2.msra.mxu0 0.0
        %296 = vmatprep.subr.mxu0 0.0
        %297 = vmatpush2.msra.mxu0 0.0
        %298 = vmatprep.subr.mxu0 0.0
        %299 = vmatpush2.msra.mxu0 0.0
        %300 = vmatprep.subr.mxu0 0.0
        %301 = vmatpush2.msra.mxu0 0.0
        %302 = vmatprep.subr.mxu0 0.0
        %303 = vmatpush2.msra.mxu0 0.0
        %304 = vmatprep.subr.mxu0 0.0
        %305 = vmatpush2.msra.mxu0 0.0
        %306 = vmatprep.subr.mxu0 0.0
        %307 = vmatpush2.msra.mxu0 0.0
        %308 = vmatprep.subr.mxu0 0.0
        %309 = vmatpush2.msra.mxu0 0.0
        %310 = vmatprep.subr.mxu0 0.0
        %311 = vmatpush2.msra.mxu0 0.0
        %312 = vmatprep.subr.mxu0 0.0
        %313 = vmatpush2.msra.mxu0 0.0
        %314 = vmatprep.subr.mxu0 0.0
        %315 = vmatpush2.msra.mxu0 0.0
        %316 = vmatprep.mubr.f32.mxu0 0.0
        %317 = vmatmul.mubr.f32.gmra.mxu0 %v206
        %v318 = vpop.f32.mrf.mxu0
        %v319 = vadd.f32 %v245, %v318
        %v320 = vpop.f32.mrf.mxu0
        %v321 = vadd.f32 %v249, %v320
        %322 = vmatprep.mubr.f32.mxu0 0.0
        %323 = vmatmul.mubr.f32.gmra.mxu0 %v207
        %v324 = vpop.f32.mrf.mxu0
        %v325 = vadd.f32 %v245, %v324
        %v326 = vpop.f32.mrf.mxu0
        %v327 = vadd.f32 %v249, %v326
        %328 = vdwg.mxu0
        %v329 = vmax.f32 %v319, 0.0
        %v330 = vmax.f32 %v325, 0.0
        %v331 = vxor.u32 %v321, 2147483648
        %v332 = vxor.u32 %v327, 2147483648
        %v333 = vmul.f32 %v331, 1.442695
        %v334 = vpow.pop %v333
        %v335 = vmul.f32 %v332, 1.442695
        %v336 = vpow.pop %v335
        %v337 = vadd.f32 %v334, 1.0
        %v338 = vadd.f32 %v336, 1.0
        %v339 = vrcp.pop %v337
        %v340 = vmul.f32 1.0, %v339
        %v341 = vrcp.pop %v338
        %v342 = vmul.f32 1.0, %v341
        %v343 = vsub.f32 %v329, %v206
        %v344 = vsub.f32 %v330, %v207
        %v345 = vmul.f32 %v340, %v343
        %v346 = vmul.f32 %v342, %v344
        %v347 = vadd.f32 %v206, %v345
        %v348 = vadd.f32 %v207, %v346
        %349 = vst [vmem:[%s203] sm:$0xff] %v347
        %350 = vst [vmem:[%s203 + $0x8] sm:$0xff] %v348
        %s351 = sand.u32 %s97, 1
        %s352 = scalar_lea.sflag [#allocation4], %s351
        %s353 = sand.u32 %s97, 1
        %s354 = smul.addr %s353, 16
        %s355 = scalar_lea.vmem [#allocation7], %s354
        // Predicated region
        $region41: #{tpu_custom_call.1} parent=31 // pred_check
          %p356 = pneg %p107
        $region42: #{tpu_custom_call.1} parent=31 // pred_check_branch
          %358 = sbr.rel (%p356) target = $region44
        $region43: #{tpu_custom_call.1} parent=31 // pred_region
          %s359 = smul.u32 2, %s21
          %s361 = ssub.s32 256, 256
          %362 = vsyncadd %s352, %s361
          %s363 = smul.addr %s359, 128
          %s364 = scalar_lea.hbm %s3, %s363
          %s365 = sshll.u32 %s355, 4
          %s366 = int_to_ptr.vmem [resolvable:$true] %s365
          %371 = dma.vmem_to_hbm [thread:$0]  %s366, 256, %s364, %s352, 128, 128, 8
        $region44: #{tpu_custom_call.1} parent=31 // pred_fallthru
          _
      $region32: #{tpu_custom_call.1} parent=5 // pred_fallthru
        _
      %p372 = scmp.le.s32.totalorder 2, %s16
      // Predicated region
      $region45: #{tpu_custom_call.1} parent=5 // pred_check
        %p373 = pneg %p372
      $region46: #{tpu_custom_call.1} parent=5 // pred_check_branch
        %375 = sbr.rel (%p373) target = $region48
      $region47: #{tpu_custom_call.1} parent=5 // pred_region
        %s376 = ssub.s32 %s16, 2
        // Predicated region
        $region49: #{tpu_custom_call.1} parent=47 // pred_check
          %p377 = pneg %p113
        $region50: #{tpu_custom_call.1} parent=47 // pred_check_branch
          %379 = sbr.rel (%p377) target = $region52
        $region51: #{tpu_custom_call.1} parent=47 // pred_region
          %s380 = sand.u32 %s98, 1
          %s381 = scalar_lea.sflag [#allocation4], %s380
          %s382 = sand.u32 %s98, 1
          %s383 = smul.addr %s382, 16
          %s384 = scalar_lea.vmem [#allocation7], %s383
          %385 = dma.done %s381, 256
        $region52: #{tpu_custom_call.1} parent=47 // pred_fallthru
          _
      $region48: #{tpu_custom_call.1} parent=5 // pred_fallthru
        _
    $region6: #{tpu_custom_call.1} parent=1 // loop_footer
      %s20 = sadd.s32 1, %s16
    $region7: #{tpu_custom_call.1} parent=1 // loop_footer_branch
      %15 = sbr.rel target = $region3
    $region8: #{tpu_custom_call.1} parent=1 // loop_exit
      _
    %386 = vsyncpa [#allocation3], 1
    %s387 = scalar_lea.sflag [#allocation3], 1
    %388 = vsyncpa %s387, 1
    %389 = vsyncpa [#allocation6], 1
    %390 = vsyncpa [#allocation4], 1
    %s391 = scalar_lea.sflag [#allocation4], 1
    %392 = vsyncpa %s391, 1

</llo_original>
